<compile_context>
chip_gen: v7x
topology: tpu7x:2x2x1
jax: 0.10.0
libtpu: 0.0.40
codegen_flags: <defaults>
</compile_context>

<pallas_src>
import jax
import jax.numpy as jnp
from jax.experimental import pallas as pl
from jax.experimental.pallas import tpu as pltpu


def _rbf_net_kernel(xa_ref, ca_ref, w_ref, b_ref, ot_ref):
    """Fused gaussian-RBF + Linear, transposed (batch-on-lanes) layout.

    xa_ref: (D+2, Tn)  augmented x^T        ca_ref: (H, D+2) augmented centres
    w_ref : (O, H)     linear weight        b_ref : (O, 1)   linear bias
    ot_ref: (O, Tn)    transposed output (lane-dense)
    """
    # arg = -||x - c||^2 / sigma^2, entirely on the MXU (K = D+2, trivially small).
    arg = jnp.dot(ca_ref[...], xa_ref[...], preferred_element_type=jnp.float32)  # (H, Tn)
    # Exact form can never be positive; clamp guards the expanded form against
    # catastrophic-cancellation drift.  1 VALU op/elem, free next to the EUP exp.
    arg = jnp.minimum(arg, 0.0)
    phi = jnp.exp(arg)                                                            # (H, Tn)

    # Linear(H -> O): out^T = W @ phi + b, stored lane-dense.
    out = jnp.dot(w_ref[...], phi.astype(w_ref.dtype),
                  preferred_element_type=jnp.float32) + b_ref[...]                # (O, Tn)
    ot_ref[...] = out.astype(ot_ref.dtype)


def network_forward(x, centres, log_sigmas, w, b, *,
                    tile_n=16384, phi_dtype=jnp.float32):
    """x: (N, D) -> (N, O).  Single fused Pallas call, tiled over the batch.

    phi_dtype=jnp.bfloat16 halves vreg/VMEM pressure of the basis activations and uses
    the bf16 MXU path for the second matmul on v6e/v7x (f32 accumulation); default f32
    matches the PyTorch module bit-for-bit semantics.
    """
    n, d = x.shape
    h = centres.shape[0]
    o = w.shape[0]
    f32 = jnp.float32

    # ---- wrapper-side parameter preprocessing (tiny, done once) ----
    xf = x.astype(f32)
    c = centres.astype(f32)                                             # (H, D)
    inv_sig2 = jnp.exp(-2.0 * log_sigmas.astype(f32)).reshape(h, 1)     # 1/sigma^2, (H,1)
    c_sq = jnp.sum(c * c, axis=1, keepdims=True)                        # (H, 1)

    # Augmented operands so that  C_aug @ x_aug^T == -||x - c||^2 / sigma^2.
    c_aug = jnp.concatenate([2.0 * inv_sig2 * c, -inv_sig2 * c_sq, -inv_sig2], axis=1)  # (H, D+2)
    x_aug_t = jnp.concatenate(
        [xf.T, jnp.ones((1, n), f32), jnp.sum(xf * xf, axis=1)[None, :]], axis=0)       # (D+2, N)
    d_aug = d + 2

    wm = w.astype(phi_dtype)                                            # (O, H)
    bb = b.astype(f32).reshape(o, 1)                                    # (O, 1)

    # ---- batch tiling: lane axis must come in multiples of 128 ----
    tn = max(128, pl.cdiv(int(tile_n), 128) * 128)
    n128 = pl.cdiv(n, 128) * 128
    tn = min(tn, n128)
    # Keep >= 2 batch tiles when the batch allows it, so the "parallel" grid axis can
    # shard across v7x's two TensorCores.
    if n128 // tn < 2 and n128 >= 256:
        tn = pl.cdiv(pl.cdiv(n128, 2), 128) * 128
    n_pad = pl.cdiv(n128, tn) * tn
    if n_pad != n:
        # Zero padding is safe: padded columns give arg = 0 -> phi = 1 -> finite output,
        # and are sliced off below.
        x_aug_t = jnp.pad(x_aug_t, ((0, 0), (0, n_pad - n)))

    grid = (n_pad // tn,)

    out_t = pl.pallas_call(
        _rbf_net_kernel,
        out_shape=jax.ShapeDtypeStruct((o, n_pad), f32),
        grid=grid,
        in_specs=[
            pl.BlockSpec((d_aug, tn), lambda i: (0, i)),    # augmented x^T, tiled over batch
            pl.BlockSpec((h, d_aug), lambda i: (0, 0)),     # augmented centres (resident)
            pl.BlockSpec((o, h), lambda i: (0, 0)),         # linear W (resident)
            pl.BlockSpec((o, 1), lambda i: (0, 0)),         # linear b (resident)
        ],
        out_specs=pl.BlockSpec((o, tn), lambda i: (0, i)),  # out^T, lane-dense stores
        compiler_params=pltpu.CompilerParams(
            dimension_semantics=("parallel",),
            vmem_limit_bytes=32 * 1024 * 1024),
    )(x_aug_t, c_aug, wm, bb)

    # TODO(synk): consumers that can take the lane-dense (O, N) layout directly should use
    # out_t[:, :n] and skip this final transpose (it is the only remaining extra HBM pass).
    return out_t[:, :n].T                                               # (N, O)


def _reference_forward(x, centres, log_sigmas, w, b):
    # Pure-JAX reference mirroring the PyTorch RBF(gaussian) + Linear forward.
    diff = x[:, None, :] - centres[None, :, :]                          # (N, H, D)
    dist = jnp.sqrt(jnp.sum(diff * diff, axis=-1)) / jnp.exp(log_sigmas)[None, :]
    phi = jnp.exp(-(dist ** 2))
    return phi @ w.T + b


if __name__ == "__main__":
    # Shapes implied by the module: layer_widths=[2, 3], layer_centres=[40].
    N, D, H, O = 8, 2, 40, 3

    key = jax.random.PRNGKey(0)
    k_x, k_c, k_w, k_b = jax.random.split(key, 4)

    x = jax.random.normal(k_x, (N, D), dtype=jnp.float32)

    # RBF params: centres ~ N(0,1), log_sigmas = 0 (PyTorch RBF reset_parameters).
    centres = jax.random.normal(k_c, (H, D), dtype=jnp.float32)
    log_sigmas = jnp.zeros((H,), dtype=jnp.float32)

    # Linear(40, 3) params: uniform init in +/- 1/sqrt(fan_in).
    bound = 1.0 / jnp.sqrt(jnp.float32(H))
    w = jax.random.uniform(k_w, (O, H), minval=-bound, maxval=bound, dtype=jnp.float32)
    b = jax.random.uniform(k_b, (O,), minval=-bound, maxval=bound, dtype=jnp.float32)

    out = network_forward(x, centres, log_sigmas, w, b)
    out = jax.block_until_ready(out)

    ref = _reference_forward(x, centres, log_sigmas, w, b)
    assert out.shape == (N, O)
    # Tolerance is slightly loose because the augmented-matmul expansion reorders the
    # float ops of ||x - c||^2 relative to the naive (x - c)^2 reference.
    assert jnp.allclose(out, ref, atol=2e-4, rtol=2e-4), "mismatch vs JAX reference"

    print("KERNEL_OK")
</pallas_src>

<mosaic_0001>
module attributes {stable_mosaic.version = 11 : i64} {
  func.func @_rbf_net_kernel(%arg0: i32, %arg1: memref<4x128xf32, #tpu.memory_space<vmem>>, %arg2: memref<40x4xf32, #tpu.memory_space<vmem>>, %arg3: memref<3x40xf32, #tpu.memory_space<vmem>>, %arg4: memref<3x1xf32, #tpu.memory_space<vmem>>, %arg5: memref<3x128xf32, #tpu.memory_space<vmem>>) attributes {dimension_semantics = [#tpu.dimension_semantics<parallel>], iteration_bounds = array<i64: 1>, scalar_prefetch = 0 : i64, scratch_operands = 0 : i64, tpu.core_type = #tpu.core_type<tc>, window_params = [{transform_indices = @transform_0, window_bounds = array<i64: 4, 128>}, {pipeline_mode = #tpu.pipeline_mode<synchronous>, transform_indices = @transform_1, window_bounds = array<i64: 40, 4>}, {pipeline_mode = #tpu.pipeline_mode<synchronous>, transform_indices = @transform_2, window_bounds = array<i64: 3, 40>}, {pipeline_mode = #tpu.pipeline_mode<synchronous>, transform_indices = @transform_3, window_bounds = array<i64: 3, 1>}, {transform_indices = @transform_4, window_bounds = array<i64: 3, 128>}]} {
    %c0 = arith.constant 0 : index
    %c0_0 = arith.constant 0 : index
    %0 = vector.load %arg2[%c0, %c0_0] : memref<40x4xf32, #tpu.memory_space<vmem>>, vector<40x4xf32>
    %c0_1 = arith.constant 0 : index
    %c0_2 = arith.constant 0 : index
    %1 = vector.load %arg1[%c0_1, %c0_2] : memref<4x128xf32, #tpu.memory_space<vmem>>, vector<4x128xf32>
    %cst = arith.constant dense<0.000000e+00> : vector<40x128xf32>
    %2 = tpu.matmul %0, %1, %cst {dimension_numbers = #tpu.dot_dimension_numbers<[1], [0], [0], [1], [0, 0, 1, 1], [], []>} : vector<40x4xf32>, vector<4x128xf32>, vector<40x128xf32> -> vector<40x128xf32>
    %cst_3 = arith.constant 0.000000e+00 : f32
    %3 = vector.broadcast %cst_3 : f32 to vector<40x128xf32>
    %4 = arith.minimumf %2, %3 : vector<40x128xf32>
    %5 = math.exp %4 : vector<40x128xf32>
    %c0_4 = arith.constant 0 : index
    %c0_5 = arith.constant 0 : index
    %6 = vector.load %arg3[%c0_4, %c0_5] : memref<3x40xf32, #tpu.memory_space<vmem>>, vector<3x40xf32>
    %cst_6 = arith.constant dense<0.000000e+00> : vector<3x128xf32>
    %7 = tpu.matmul %6, %5, %cst_6 {dimension_numbers = #tpu.dot_dimension_numbers<[1], [0], [0], [1], [0, 0, 1, 1], [], []>} : vector<3x40xf32>, vector<40x128xf32>, vector<3x128xf32> -> vector<3x128xf32>
    %c0_7 = arith.constant 0 : index
    %c0_8 = arith.constant 0 : index
    %8 = vector.load %arg4[%c0_7, %c0_8] : memref<3x1xf32, #tpu.memory_space<vmem>>, vector<3x1xf32>
    %9 = vector.broadcast %8 : vector<3x1xf32> to vector<3x128xf32>
    %10 = arith.addf %7, %9 : vector<3x128xf32>
    %c0_9 = arith.constant 0 : index
    %c0_10 = arith.constant 0 : index
    %11 = vector.load %arg5[%c0_9, %c0_10] : memref<3x128xf32, #tpu.memory_space<vmem>>, vector<3x128xf32>
    tpu.vector_store %arg5[%c0_9, %c0_10], %10 {strides = array<i32>} : memref<3x128xf32, #tpu.memory_space<vmem>>, vector<3x128xf32>,
    return
  }
  func.func @transform_0(%arg0: i32) -> (i32, i32) {
    %c0_i32 = arith.constant 0 : i32
    %c0_i32_0 = arith.constant 0 : i32
    return %c0_i32, %arg0 : i32, i32
  }
  func.func @transform_1(%arg0: i32) -> (i32, i32) {
    %c0_i32 = arith.constant 0 : i32
    %c0_i32_0 = arith.constant 0 : i32
    %c0_i32_1 = arith.constant 0 : i32
    return %c0_i32, %c0_i32_0 : i32, i32
  }
  func.func @transform_2(%arg0: i32) -> (i32, i32) {
    %c0_i32 = arith.constant 0 : i32
    %c0_i32_0 = arith.constant 0 : i32
    %c0_i32_1 = arith.constant 0 : i32
    return %c0_i32, %c0_i32_0 : i32, i32
  }
  func.func @transform_3(%arg0: i32) -> (i32, i32) {
    %c0_i32 = arith.constant 0 : i32
    %c0_i32_0 = arith.constant 0 : i32
    %c0_i32_1 = arith.constant 0 : i32
    return %c0_i32, %c0_i32_0 : i32, i32
  }
  func.func @transform_4(%arg0: i32) -> (i32, i32) {
    %c0_i32 = arith.constant 0 : i32
    %c0_i32_0 = arith.constant 0 : i32
    return %c0_i32, %arg0 : i32, i32
  }
}

</mosaic_0001>

<llo_original>
// kernel: tpu_custom_call.1
$region0: #{tpu_custom_call.1}
  #allocation0 [shape = 'u32[]', space=smem, size = 0x4, offset = 0x4, fixed_abs, tag = 'smem constant byte address 0x4 - core index']
  #allocation1 [shape = 'u32[144,128]{1,0:T(1,128)}', space=vmem, size = 0x12000, scoped, tag = 'internal scratch']
  %s0 = inlined_call_operand.vmem [shape: f32[4,128], index: 0, kind: input, shape index: {}]
  %s1 = inlined_call_operand.vmem [shape: f32[40,4], index: 1, kind: input, shape index: {}]
  %s2 = inlined_call_operand.vmem [shape: f32[3,40], index: 2, kind: input, shape index: {}]
  %s3 = inlined_call_operand.vmem [shape: f32[3,1], index: 3, kind: input, shape index: {}]
  %s4 = inlined_call_operand.hbm [shape: f32[3,128], index: 4, kind: output, shape index: {}]
  %s5 = sld [smem:[#allocation0]]
  $region26: #{tpu_custom_call.1} parent=0
    _
  %s7 = ssub.s32 1, %s5
  %s8 = scalar_select 0, %s7, %s5
  $region1: #{tpu_custom_call.1} parent=0
    #allocation2 [shape = 'u8[2048]{0}', space=vmem, size = 0x800, scoped, tag = 'output window, operand 0, single buffered']
    #allocation3 [shape = 's32[1]{0}', space=sflag, size = 0x4, scoped, tag = 'scoped memory for tpu_custom_call.1']
    %9 = vsyncpa [#allocation3], 0
    // Predicated region
    $region2: #{tpu_custom_call.1} parent=1 // pred_check
      _
    $region3: #{tpu_custom_call.1} parent=1 // pred_check_branch
      %11 = sbr.rel (0) target = $region5
    $region4: #{tpu_custom_call.1} parent=1 // pred_region
      _
    $region5: #{tpu_custom_call.1} parent=1 // pred_fallthru
      _
    // Predicated region
    $region6: #{tpu_custom_call.1} parent=1 // pred_check
      _
    $region7: #{tpu_custom_call.1} parent=1 // pred_check_branch
      %13 = sbr.rel (0) target = $region9
    $region8: #{tpu_custom_call.1} parent=1 // pred_region
      _
    $region9: #{tpu_custom_call.1} parent=1 // pred_fallthru
      _
    // Predicated region
    $region10: #{tpu_custom_call.1} parent=1 // pred_check
      _
    $region11: #{tpu_custom_call.1} parent=1 // pred_check_branch
      %15 = sbr.rel (0) target = $region13
    $region12: #{tpu_custom_call.1} parent=1 // pred_region
      _
    $region13: #{tpu_custom_call.1} parent=1 // pred_fallthru
      _
    // Predicated region
    $region14: #{tpu_custom_call.1} parent=1 // pred_check
      _
    $region15: #{tpu_custom_call.1} parent=1 // pred_check_branch
      %17 = sbr.rel (0) target = $region17
    $region16: #{tpu_custom_call.1} parent=1 // pred_region
      _
    $region17: #{tpu_custom_call.1} parent=1 // pred_fallthru
      _
    %v18 = vld [vmem:[%s1] sm:$0xff]
    %v19 = vld [vmem:[%s1 + $0x8] sm:$0xff]
    %v20 = vld [vmem:[%s1 + $0x10] sm:$0xff]
    %v21 = vld [vmem:[%s1 + $0x18] sm:$0xff]
    %v22 = vld [vmem:[%s1 + $0x20] sm:$0xff]
    %v23 = vld [vmem:[%s0] sm:$0xf]
    %vm24 = vcmask 31744
    %v26 = vsel %vm24, %v18, 0
    %v29 = vsel %vm24, %v19, 0
    %v32 = vsel %vm24, %v20, 0
    %v35 = vsel %vm24, %v21, 0
    %v38 = vsel %vm24, %v22, 0
    %vm40 = vcmask 1043456
    %v42 = vsel %vm40, %v23, 0
    %44 = vmatprep.subr.mxu0 0.0
    %45 = vmatpush1.msra.mxu0 %v42
    %46 = vmatprep.subr.mxu0 0.0
    %47 = vmatpush1.msra.mxu0 0.0
    %48 = vmatprep.subr.mxu0 0.0
    %49 = vmatpush1.msra.mxu0 0.0
    %50 = vmatprep.subr.mxu0 0.0
    %51 = vmatpush1.msra.mxu0 0.0
    %52 = vmatprep.subr.mxu0 0.0
    %53 = vmatpush1.msra.mxu0 0.0
    %54 = vmatprep.subr.mxu0 0.0
    %55 = vmatpush1.msra.mxu0 0.0
    %56 = vmatprep.subr.mxu0 0.0
    %57 = vmatpush1.msra.mxu0 0.0
    %58 = vmatprep.subr.mxu0 0.0
    %59 = vmatpush1.msra.mxu0 0.0
    %60 = vmatprep.subr.mxu0 0.0
    %61 = vmatpush1.msra.mxu0 0.0
    %62 = vmatprep.subr.mxu0 0.0
    %63 = vmatpush1.msra.mxu0 0.0
    %64 = vmatprep.subr.mxu0 0.0
    %65 = vmatpush1.msra.mxu0 0.0
    %66 = vmatprep.subr.mxu0 0.0
    %67 = vmatpush1.msra.mxu0 0.0
    %68 = vmatprep.subr.mxu0 0.0
    %69 = vmatpush1.msra.mxu0 0.0
    %70 = vmatprep.subr.mxu0 0.0
    %71 = vmatpush1.msra.mxu0 0.0
    %72 = vmatprep.subr.mxu0 0.0
    %73 = vmatpush1.msra.mxu0 0.0
    %74 = vmatprep.subr.mxu0 0.0
    %75 = vmatpush1.msra.mxu0 0.0
    %76 = vmatprep.subr.mxu0 0.0
    %77 = vmatpush1.msra.mxu0 0.0
    %78 = vmatprep.subr.mxu0 0.0
    %79 = vmatpush1.msra.mxu0 0.0
    %80 = vmatprep.subr.mxu0 0.0
    %81 = vmatpush1.msra.mxu0 0.0
    %82 = vmatprep.subr.mxu0 0.0
    %83 = vmatpush1.msra.mxu0 0.0
    %84 = vmatprep.subr.mxu0 0.0
    %85 = vmatpush1.msra.mxu0 0.0
    %86 = vmatprep.subr.mxu0 0.0
    %87 = vmatpush1.msra.mxu0 0.0
    %88 = vmatprep.subr.mxu0 0.0
    %89 = vmatpush1.msra.mxu0 0.0
    %90 = vmatprep.subr.mxu0 0.0
    %91 = vmatpush1.msra.mxu0 0.0
    %92 = vmatprep.subr.mxu0 0.0
    %93 = vmatpush1.msra.mxu0 0.0
    %94 = vmatprep.subr.mxu0 0.0
    %95 = vmatpush1.msra.mxu0 0.0
    %96 = vmatprep.subr.mxu0 0.0
    %97 = vmatpush1.msra.mxu0 0.0
    %98 = vmatprep.subr.mxu0 0.0
    %99 = vmatpush1.msra.mxu0 0.0
    %100 = vmatprep.subr.mxu0 0.0
    %101 = vmatpush1.msra.mxu0 0.0
    %102 = vmatprep.subr.mxu0 0.0
    %103 = vmatpush1.msra.mxu0 0.0
    %104 = vmatprep.subr.mxu0 0.0
    %105 = vmatpush1.msra.mxu0 0.0
    %106 = vmatprep.subr.mxu0 0.0
    %107 = vmatpush1.msra.mxu0 0.0
    %108 = vmatprep.mubr.f32.mxu0 0.0
    %109 = vmatmul.mubr.f32.gmra.mrb[0].mxu0 %v26
    %v110 = vpop.f32.mrb[0].mxu0
    %v111 = vadd.f32 0.0, %v110
    %v112 = vpop.f32.mrb[0].mxu0
    %113 = vmatprep.mubr.f32.mxu0 0.0
    %114 = vmatmul.mubr.f32.gmra.mrb[0].mxu0 %v29
    %v115 = vpop.f32.mrb[0].mxu0
    %v116 = vadd.f32 0.0, %v115
    %v117 = vpop.f32.mrb[0].mxu0
    %118 = vmatprep.mubr.f32.mxu0 0.0
    %119 = vmatmul.mubr.f32.gmra.mrb[0].mxu0 %v32
    %v120 = vpop.f32.mrb[0].mxu0
    %v121 = vadd.f32 0.0, %v120
    %v122 = vpop.f32.mrb[0].mxu0
    %123 = vmatprep.mubr.f32.mxu0 0.0
    %124 = vmatmul.mubr.f32.gmra.mrb[0].mxu0 %v35
    %v125 = vpop.f32.mrb[0].mxu0
    %v126 = vadd.f32 0.0, %v125
    %v127 = vpop.f32.mrb[0].mxu0
    %128 = vmatprep.mubr.f32.mxu0 0.0
    %129 = vmatmul.mubr.f32.gmra.mrb[0].mxu0 %v38
    %v130 = vpop.f32.mrb[0].mxu0
    %v131 = vadd.f32 0.0, %v130
    %v132 = vpop.f32.mrb[0].mxu0
    %133 = vdwg.mxu0
    %v134 = vmin.f32 %v111, 0.0
    %v135 = vmin.f32 %v116, 0.0
    %v136 = vmin.f32 %v121, 0.0
    %v137 = vmin.f32 %v126, 0.0
    %v138 = vmin.f32 %v131, 0.0
    %v139 = vmul.f32 %v134, 1.442695
    %v140 = vpow.pop %v139
    %v141 = vmul.f32 %v135, 1.442695
    %v142 = vpow.pop %v141
    %v143 = vmul.f32 %v136, 1.442695
    %v144 = vpow.pop %v143
    %v145 = vmul.f32 %v137, 1.442695
    %v146 = vpow.pop %v145
    %v147 = vmul.f32 %v138, 1.442695
    %v148 = vpow.pop %v147
    %v149 = vld [vmem:[%s2] sm:$0x7]
    %v150 = vld [vmem:[%s3] sm:$0x7]
    %152 = vset.pattern.permute.xlu0 0
    %153 = vperm.xlu0 %152, %v150
    %v154 = vpop.permute.xlu0 %153
    %vm156 = vcmask 326656
    %v158 = vsel %vm156, %v149, 0
    %160 = vmatprep.subr.mxu0 0.0
    %161 = vmatpush1.msra.mxu0 %v140
    %162 = vmatprep.subr.mxu0 0.0
    %163 = vmatpush1.msra.mxu0 %v142
    %164 = vmatprep.subr.mxu0 0.0
    %165 = vmatpush1.msra.mxu0 %v144
    %166 = vmatprep.subr.mxu0 0.0
    %167 = vmatpush1.msra.mxu0 %v146
    %168 = vmatprep.subr.mxu0 0.0
    %169 = vmatpush1.msra.mxu0 %v148
    %170 = vmatprep.subr.mxu0 0.0
    %171 = vmatpush1.msra.mxu0 0.0
    %172 = vmatprep.subr.mxu0 0.0
    %173 = vmatpush1.msra.mxu0 0.0
    %174 = vmatprep.subr.mxu0 0.0
    %175 = vmatpush1.msra.mxu0 0.0
    %176 = vmatprep.subr.mxu0 0.0
    %177 = vmatpush1.msra.mxu0 0.0
    %178 = vmatprep.subr.mxu0 0.0
    %179 = vmatpush1.msra.mxu0 0.0
    %180 = vmatprep.subr.mxu0 0.0
    %181 = vmatpush1.msra.mxu0 0.0
    %182 = vmatprep.subr.mxu0 0.0
    %183 = vmatpush1.msra.mxu0 0.0
    %184 = vmatprep.subr.mxu0 0.0
    %185 = vmatpush1.msra.mxu0 0.0
    %186 = vmatprep.subr.mxu0 0.0
    %187 = vmatpush1.msra.mxu0 0.0
    %188 = vmatprep.subr.mxu0 0.0
    %189 = vmatpush1.msra.mxu0 0.0
    %190 = vmatprep.subr.mxu0 0.0
    %191 = vmatpush1.msra.mxu0 0.0
    %192 = vmatprep.subr.mxu0 0.0
    %193 = vmatpush1.msra.mxu0 0.0
    %194 = vmatprep.subr.mxu0 0.0
    %195 = vmatpush1.msra.mxu0 0.0
    %196 = vmatprep.subr.mxu0 0.0
    %197 = vmatpush1.msra.mxu0 0.0
    %198 = vmatprep.subr.mxu0 0.0
    %199 = vmatpush1.msra.mxu0 0.0
    %200 = vmatprep.subr.mxu0 0.0
    %201 = vmatpush1.msra.mxu0 0.0
    %202 = vmatprep.subr.mxu0 0.0
    %203 = vmatpush1.msra.mxu0 0.0
    %204 = vmatprep.subr.mxu0 0.0
    %205 = vmatpush1.msra.mxu0 0.0
    %206 = vmatprep.subr.mxu0 0.0
    %207 = vmatpush1.msra.mxu0 0.0
    %208 = vmatprep.subr.mxu0 0.0
    %209 = vmatpush1.msra.mxu0 0.0
    %210 = vmatprep.subr.mxu0 0.0
    %211 = vmatpush1.msra.mxu0 0.0
    %212 = vmatprep.subr.mxu0 0.0
    %213 = vmatpush1.msra.mxu0 0.0
    %214 = vmatprep.subr.mxu0 0.0
    %215 = vmatpush1.msra.mxu0 0.0
    %216 = vmatprep.subr.mxu0 0.0
    %217 = vmatpush1.msra.mxu0 0.0
    %218 = vmatprep.subr.mxu0 0.0
    %219 = vmatpush1.msra.mxu0 0.0
    %220 = vmatprep.subr.mxu0 0.0
    %221 = vmatpush1.msra.mxu0 0.0
    %222 = vmatprep.subr.mxu0 0.0
    %223 = vmatpush1.msra.mxu0 0.0
    %224 = vmatprep.mubr.f32.mxu0 0.0
    %225 = vmatmul.mubr.f32.gmra.mrb[0].mxu0 %v158
    %v226 = vpop.f32.mrb[0].mxu0
    %v227 = vadd.f32 %v154, %v226
    %v228 = vpop.f32.mrb[0].mxu0
    %229 = vdwg.mxu0
    %230 = vst [vmem:[#allocation2] sm:$0x7] %v227
    // Predicated region
    $region18: #{tpu_custom_call.1} parent=1 // pred_check
      _
    $region19: #{tpu_custom_call.1} parent=1 // pred_check_branch
      %232 = sbr.rel (0) target = $region21
    $region20: #{tpu_custom_call.1} parent=1 // pred_region
      %s234 = ssub.s32 64, 64
      %235 = vsyncadd [#allocation3], %s234
      %s237 = sshll.u32 [#allocation2], 4
      %s238 = int_to_ptr.vmem [resolvable:$true] %s237
      %240 = dma.vmem_to_hbm [thread:$0]  %s238, 64, %s4, [#allocation3]
    $region21: #{tpu_custom_call.1} parent=1 // pred_fallthru
      _
    // Predicated region
    $region22: #{tpu_custom_call.1} parent=1 // pred_check
      _
    $region23: #{tpu_custom_call.1} parent=1 // pred_check_branch
      %242 = sbr.rel (0) target = $region25
    $region24: #{tpu_custom_call.1} parent=1 // pred_region
      %243 = dma.done [#allocation3], 64
    $region25: #{tpu_custom_call.1} parent=1 // pred_fallthru
      _
    %244 = vsyncpa [#allocation3], 1

</llo_original>
